<compile_context>
chip_gen: v6e
topology: v6e:2x2x1
jax: 0.10.0
libtpu: 0.0.40
codegen_flags: <defaults>
</compile_context>

<pallas_src>
import jax
import jax.numpy as jnp
from jax.experimental import pallas as pl
from jax.experimental.pallas import tpu as pltpu


def _interp_matrix(n_in: int, n_out: int) -> jnp.ndarray:
    """Row-stochastic (n_out, n_in) matrix implementing 1-D linear interpolation
    with PyTorch's align_corners=True convention."""
    if n_in == 1:
        return jnp.ones((n_out, 1), dtype=jnp.float32)
    if n_out == 1:
        src = jnp.zeros((1,), dtype=jnp.float32)
    else:
        src = jnp.arange(n_out, dtype=jnp.float32) * (n_in - 1) / (n_out - 1)
    lo = jnp.clip(jnp.floor(src).astype(jnp.int32), 0, n_in - 2)
    hi = lo + 1
    w_hi = src - lo.astype(jnp.float32)
    w_lo = 1.0 - w_hi
    rows = jnp.arange(n_out)
    A = jnp.zeros((n_out, n_in), dtype=jnp.float32)
    A = A.at[rows, lo].add(w_lo)
    A = A.at[rows, hi].add(w_hi)
    return A


def _pick_batch(nc: int, h: int, w: int, h_out: int, itemsize: int) -> int:
    """Number of (n, c) slices processed per grid step."""
    # Target ~512 KiB of input per step: amortizes per-step overhead while the
    # double-buffered input + (4x larger) output blocks stay well under the
    # 32 MiB default scoped VMEM (v6e/v7x) and v7x's 64 MiB physical VMEM.
    target = max(1, (512 * 1024) // max(1, h * w * itemsize))
    b = max(1, min(nc, target))
    while b > 1 and nc % b != 0:
        b -= 1
    # Keep at least 2 grid steps when possible so both v7x TensorCores get work.
    if b == nc and nc >= 2:
        b = max(1, nc // 2)
        while b > 1 and nc % b != 0:
            b -= 1
    # Fused output block is (b*H_out, W_out); its sublane dim must be a multiple
    # of 8 unless it spans the full output array.
    if (b * h_out) % 8 != 0 and b != nc:
        b = nc
    return b


def _up_kernel(ah_ref, awt_ref, x_ref, o_ref):
    # ah_ref : (H_out, H_in)     interpolation matrix along H
    # awt_ref: (W_in, W_out)     transposed interpolation matrix along W
    # x_ref  : (B, H_in, W_in)   B (n, c) image slices
    # o_ref  : (B*H_out, W_out)  their upsampled outputs, stacked along rows
    x = x_ref[...]                      # keep input dtype (no f32 upcast)
    ah = ah_ref[...]
    awt = awt_ref[...]
    B, H_in, W_in = x.shape
    H_out = ah.shape[0]

    # H pass: batched matmul over the B slices (MXU, f32 accumulation).
    ah_b = jnp.broadcast_to(ah[None], (B, H_out, H_in))
    t = jnp.einsum("boh,bhw->bow", ah_b, x,
                   preferred_element_type=jnp.float32)        # (B, H_out, W_in)

    # W pass: fuse all slices into one big 2-D matmul (M = B*H_out >= 128) and
    # write the result as a single contiguous output slab.
    t2 = t.reshape(B * H_out, W_in).astype(x.dtype)
    out = jnp.dot(t2, awt, preferred_element_type=jnp.float32)  # (B*H_out, W_out)
    o_ref[...] = out.astype(o_ref.dtype)


def up_bilinear_x2(x: jnp.ndarray) -> jnp.ndarray:
    """Equivalent of Up(in_channels, bilinear=True).forward(x) on NCHW input:
    nn.Upsample(scale_factor=2, mode='bilinear', align_corners=True)."""
    N, C, H, W = x.shape
    H_out, W_out = 2 * H, 2 * W
    NC = N * C
    itemsize = jnp.dtype(x.dtype).itemsize

    a_dtype = x.dtype if jnp.issubdtype(x.dtype, jnp.floating) else jnp.float32
    A_h = _interp_matrix(H, H_out).astype(a_dtype)       # (H_out, H)
    A_wT = _interp_matrix(W, W_out).T.astype(a_dtype)    # (W, W_out)

    x_flat = x.reshape(NC, H, W)
    B = _pick_batch(NC, H, W, H_out, itemsize)
    grid = (NC // B,)

    flops = 2 * NC * (H_out * H * W + H_out * W * W_out)
    bytes_accessed = (NC * (H * W + H_out * W_out)) * itemsize \
        + int(A_h.size + A_wT.size) * jnp.dtype(a_dtype).itemsize

    out_flat = pl.pallas_call(
        _up_kernel,
        out_shape=jax.ShapeDtypeStruct((NC * H_out, W_out), x.dtype),
        grid_spec=pltpu.PrefetchScalarGridSpec(
            num_scalar_prefetch=0,
            grid=grid,
            in_specs=[
                pl.BlockSpec((H_out, H), lambda i: (0, 0)),      # A_h (resident)
                pl.BlockSpec((W, W_out), lambda i: (0, 0)),      # A_w^T (resident)
                pl.BlockSpec((B, H, W), lambda i: (i, 0, 0)),    # B slices / step
            ],
            out_specs=pl.BlockSpec((B * H_out, W_out), lambda i: (i, 0)),
        ),
        compiler_params=pltpu.CompilerParams(
            dimension_semantics=("parallel",)),
        cost_estimate=pl.CostEstimate(
            flops=flops, transcendentals=0, bytes_accessed=bytes_accessed),
    )(A_h, A_wT, x_flat)

    # (NC*H_out, W_out) rows are ordered (n, c, h_out) -> free reshape back.
    return out_flat.reshape(N, C, H_out, W_out)


if __name__ == "__main__":
    # Small shapes consistent with the module: batch=2, in_channels=4, 16x16 spatial.
    key = jax.random.PRNGKey(0)
    x = jax.random.normal(key, (2, 4, 16, 16), dtype=jnp.float32)

    out = up_bilinear_x2(x)
    out = jax.block_until_ready(out)

    # Pure-JAX reference using the same separable formulation (sanity check).
    A_h = _interp_matrix(16, 32)
    A_w = _interp_matrix(16, 32)
    ref = jnp.einsum("oh,nchw,pw->ncop", A_h, x, A_w)
    assert out.shape == (2, 4, 32, 32)
    assert jnp.allclose(out, ref, atol=1e-4, rtol=1e-4)

    print("KERNEL_OK")
</pallas_src>

<mosaic_0001>
module attributes {stable_mosaic.version = 11 : i64} {
  func.func @_up_kernel(%arg0: i32, %arg1: memref<32x16xf32, #tpu.memory_space<vmem>>, %arg2: memref<16x32xf32, #tpu.memory_space<vmem>>, %arg3: memref<4x16x16xf32, #tpu.memory_space<vmem>>, %arg4: memref<128x32xf32, #tpu.memory_space<vmem>>) attributes {dimension_semantics = [#tpu.dimension_semantics<parallel>], iteration_bounds = array<i64: 2>, scalar_prefetch = 0 : i64, scratch_operands = 0 : i64, tpu.core_type = #tpu.core_type<tc>, window_params = [{pipeline_mode = #tpu.pipeline_mode<synchronous>, transform_indices = @transform_0, window_bounds = array<i64: 32, 16>}, {pipeline_mode = #tpu.pipeline_mode<synchronous>, transform_indices = @transform_1, window_bounds = array<i64: 16, 32>}, {transform_indices = @transform_2, window_bounds = array<i64: 4, 16, 16>}, {transform_indices = @transform_3, window_bounds = array<i64: 128, 32>}]} {
    %c0 = arith.constant 0 : index
    %c0_0 = arith.constant 0 : index
    %c0_1 = arith.constant 0 : index
    %0 = vector.load %arg3[%c0, %c0_0, %c0_1] : memref<4x16x16xf32, #tpu.memory_space<vmem>>, vector<4x16x16xf32>
    %c0_2 = arith.constant 0 : index
    %c0_3 = arith.constant 0 : index
    %1 = vector.load %arg1[%c0_2, %c0_3] : memref<32x16xf32, #tpu.memory_space<vmem>>, vector<32x16xf32>
    %c0_4 = arith.constant 0 : index
    %c0_5 = arith.constant 0 : index
    %2 = vector.load %arg2[%c0_4, %c0_5] : memref<16x32xf32, #tpu.memory_space<vmem>>, vector<16x32xf32>
    %3 = vector.shape_cast %1 : vector<32x16xf32> to vector<1x32x16xf32>
    %4 = vector.shape_cast %3 : vector<1x32x16xf32> to vector<1x32x16xf32>
    %5 = vector.broadcast %4 : vector<1x32x16xf32> to vector<4x32x16xf32>
    "tpu.trace_start"() <{level = 10 : i32, message = "boh,bhw->bow"}> : () -> ()
    %cst = arith.constant dense<0.000000e+00> : vector<4x32x16xf32>
    %6 = tpu.matmul %5, %0, %cst {dimension_numbers = #tpu.dot_dimension_numbers<[2], [1], [1], [2], [0, 0, 0, 1, 1, 2], [0], [0]>} : vector<4x32x16xf32>, vector<4x16x16xf32>, vector<4x32x16xf32> -> vector<4x32x16xf32>
    "tpu.trace_stop"() : () -> ()
    %7 = vector.shape_cast %6 : vector<4x32x16xf32> to vector<128x16xf32>
    %cst_6 = arith.constant dense<0.000000e+00> : vector<128x32xf32>
    %8 = tpu.matmul %7, %2, %cst_6 {dimension_numbers = #tpu.dot_dimension_numbers<[1], [0], [0], [1], [0, 0, 1, 1], [], []>} : vector<128x16xf32>, vector<16x32xf32>, vector<128x32xf32> -> vector<128x32xf32>
    %c0_7 = arith.constant 0 : index
    %c0_8 = arith.constant 0 : index
    %9 = vector.load %arg4[%c0_7, %c0_8] : memref<128x32xf32, #tpu.memory_space<vmem>>, vector<128x32xf32>
    tpu.vector_store %arg4[%c0_7, %c0_8], %8 {strides = array<i32>} : memref<128x32xf32, #tpu.memory_space<vmem>>, vector<128x32xf32>,
    return
  }
  func.func @transform_0(%arg0: i32) -> (i32, i32) {
    %c0_i32 = arith.constant 0 : i32
    %c0_i32_0 = arith.constant 0 : i32
    %c0_i32_1 = arith.constant 0 : i32
    return %c0_i32, %c0_i32_0 : i32, i32
  }
  func.func @transform_1(%arg0: i32) -> (i32, i32) {
    %c0_i32 = arith.constant 0 : i32
    %c0_i32_0 = arith.constant 0 : i32
    %c0_i32_1 = arith.constant 0 : i32
    return %c0_i32, %c0_i32_0 : i32, i32
  }
  func.func @transform_2(%arg0: i32) -> (i32, i32, i32) {
    %c0_i32 = arith.constant 0 : i32
    %c0_i32_0 = arith.constant 0 : i32
    %c0_i32_1 = arith.constant 0 : i32
    return %arg0, %c0_i32, %c0_i32_0 : i32, i32, i32
  }
  func.func @transform_3(%arg0: i32) -> (i32, i32) {
    %c0_i32 = arith.constant 0 : i32
    %c0_i32_0 = arith.constant 0 : i32
    return %arg0, %c0_i32 : i32, i32
  }
}

</mosaic_0001>

<llo_original>
// kernel: tpu_custom_call.1
$region0: #{tpu_custom_call.1}
  #allocation0 [shape = 'u32[]', space=smem, size = 0x4, offset = 0x4, fixed_abs, tag = 'smem constant byte address 0x4 - core index']
  #allocation1 [shape = 'u32[144,128]{1,0:T(1,128)}', space=vmem, size = 0x12000, scoped, tag = 'internal scratch']
  %s0 = inlined_call_operand.vmem [shape: f32[32,16], index: 0, kind: input, shape index: {}]
  %s1 = inlined_call_operand.vmem [shape: f32[16,32], index: 1, kind: input, shape index: {}]
  %s2 = inlined_call_operand.hbm [shape: f32[8,16,16], index: 2, kind: input, shape index: {}]
  %s3 = inlined_call_operand.vmem [shape: f32[256,32], index: 3, kind: output, shape index: {}]
  %s4 = sld [smem:[#allocation0]]
  $region49: #{tpu_custom_call.1} parent=0
    _
  %s6 = ssub.s32 1, %s4
  %s7 = scalar_select 0, %s6, %s4
  $region1: #{tpu_custom_call.1} parent=0
    #allocation2 [shape = 'u8[65536]{0}', space=vmem, size = 0x10000, scoped, tag = 'input window, operand 2']
    #allocation3 [shape = 's32[2]{0}', space=sflag, size = 0x8, scoped, tag = 'scoped memory for tpu_custom_call.1']
    %8 = vsyncpa [#allocation3], 0
    %s9 = scalar_lea.sflag [#allocation3], 1
    %10 = vsyncpa %s9, 0
    loop: start=0, step=1, limit=4
    $region2: #{tpu_custom_call.1} parent=1 // loop_pre_header
      _
    $region3: #{tpu_custom_call.1} parent=1 // loop_header
      %s12 = sphi 0, %s16
      %p13 = scmp.ge.s32.totalorder %s12, 4
      %s20 = sphi 0, %s20
      %s22 = sphi 0, %s20
      %s23 = sphi 0, %s22
      %s37 = sphi 0, %s23
      %s41 = sphi 0, %s41
      %s43 = sphi 0, %s41
      %s44 = sphi 0, %s43
      %s58 = sphi 0, %s44
      %s64 = sphi 0, %s66
      %s67 = sphi 0, %s64
      %s68 = sphi 0, %s67
      %s84 = sphi 0, %s68
      %s90 = sphi 0, %s92
      %s93 = sphi 0, %s90
      %s94 = sphi 0, %s93
      %s110 = sphi 0, %s94
    $region4: #{tpu_custom_call.1} parent=1 // loop_header_branch
      %15 = sbr.rel (%p13) target = $region8
    $region5: #{tpu_custom_call.1} parent=1 // loop_body
      %s17 = ssub.s32 %s12, 1
      %s18 = ssub.s32 %s12, 2
      %s19 = sadd.s32 %s12, 1
      %s21 = sadd.s32 %s20, 1
      %p24 = scmp.eq.s32.totalorder %s12, 1
      %p25 = scmp.ne.s32.totalorder %s20, %s22
      %p26 = scmp.eq.s32.totalorder %s12, 0
      %p27 = por %p25, %p26
      %p28 = scmp.ne.s32.totalorder %s20, %s22
      %p29 = scmp.eq.s32.totalorder %s17, 1
      %p30 = por %p28, %p29
      %p31 = scmp.ne.s32.totalorder %s22, %s23
      %p32 = scmp.eq.s32.totalorder %s17, 0
      %p33 = por %p31, %p32
      %p34 = scmp.ne.s32.totalorder %s22, %s23
      %p35 = scmp.eq.s32.totalorder %s18, 1
      %p36 = por %p34, %p35
      %p38 = scmp.ne.s32.totalorder %s23, %s37
      %p39 = scmp.eq.s32.totalorder %s18, 0
      %p40 = por %p38, %p39
      %s42 = sadd.s32 %s41, 1
      %p45 = scmp.eq.s32.totalorder %s12, 1
      %p46 = scmp.ne.s32.totalorder %s41, %s43
      %p47 = scmp.eq.s32.totalorder %s12, 0
      %p48 = por %p46, %p47
      %p49 = scmp.ne.s32.totalorder %s41, %s43
      %p50 = scmp.eq.s32.totalorder %s17, 1
      %p51 = por %p49, %p50
      %p52 = scmp.ne.s32.totalorder %s43, %s44
      %p53 = scmp.eq.s32.totalorder %s17, 0
      %p54 = por %p52, %p53
      %p55 = scmp.ne.s32.totalorder %s43, %s44
      %p56 = scmp.eq.s32.totalorder %s18, 1
      %p57 = por %p55, %p56
      %p59 = scmp.ne.s32.totalorder %s44, %s58
      %p60 = scmp.eq.s32.totalorder %s18, 0
      %p61 = por %p59, %p60
      %s62 = ssub.s32 %s12, %s19
      %p63 = scmp.eq.s32.totalorder %s62, 0
      %s65 = sadd.s32 %s64, 1
      %s66 = scalar_select %p63, %s64, %s65
      %p69 = pneg %p63
      %p70 = scmp.eq.s32.totalorder %s12, 1
      %p71 = por %p69, %p70
      %p72 = scmp.ne.s32.totalorder %s64, %s67
      %p73 = scmp.eq.s32.totalorder %s12, 0
      %p74 = por %p72, %p73
      %p75 = scmp.ne.s32.totalorder %s64, %s67
      %p76 = scmp.eq.s32.totalorder %s17, 1
      %p77 = por %p75, %p76
      %p78 = scmp.ne.s32.totalorder %s67, %s68
      %p79 = scmp.eq.s32.totalorder %s17, 0
      %p80 = por %p78, %p79
      %p81 = scmp.ne.s32.totalorder %s67, %s68
      %p82 = scmp.eq.s32.totalorder %s18, 1
      %p83 = por %p81, %p82
      %p85 = scmp.ne.s32.totalorder %s68, %s84
      %p86 = scmp.eq.s32.totalorder %s18, 0
      %p87 = por %p85, %p86
      %s88 = ssub.s32 %s12, %s19
      %p89 = scmp.eq.s32.totalorder %s88, 0
      %s91 = sadd.s32 %s90, 1
      %s92 = scalar_select %p89, %s90, %s91
      %p95 = pneg %p89
      %p96 = scmp.eq.s32.totalorder %s12, 1
      %p97 = por %p95, %p96
      %p98 = scmp.ne.s32.totalorder %s90, %s93
      %p99 = scmp.eq.s32.totalorder %s12, 0
      %p100 = por %p98, %p99
      %p101 = scmp.ne.s32.totalorder %s90, %s93
      %p102 = scmp.eq.s32.totalorder %s17, 1
      %p103 = por %p101, %p102
      %p104 = scmp.ne.s32.totalorder %s93, %s94
      %p105 = scmp.eq.s32.totalorder %s17, 0
      %p106 = por %p104, %p105
      %p107 = scmp.ne.s32.totalorder %s93, %s94
      %p108 = scmp.eq.s32.totalorder %s18, 1
      %p109 = por %p107, %p108
      %p111 = scmp.ne.s32.totalorder %s94, %s110
      %p112 = scmp.eq.s32.totalorder %s18, 0
      %p113 = por %p111, %p112
      %p114 = scmp.le.s32.totalorder 1, %s12
      %p115 = scmp.lt.s32.totalorder %s12, 3
      %p116 = pnand %p114, %p115
      %p117 = pneg %p116
      // Predicated region
      $region9: #{tpu_custom_call.1} parent=5 // pred_check
        _
      $region10: #{tpu_custom_call.1} parent=5 // pred_check_branch
        %119 = sbr.rel (%p116) target = $region12
      $region11: #{tpu_custom_call.1} parent=5 // pred_region
        %s120 = ssub.s32 %s12, 1
        // Predicated region
        $region13: #{tpu_custom_call.1} parent=11 // pred_check
          %p121 = pneg %p33
        $region14: #{tpu_custom_call.1} parent=11 // pred_check_branch
          %123 = sbr.rel (%p121) target = $region16
        $region15: #{tpu_custom_call.1} parent=11 // pred_region
          _
        $region16: #{tpu_custom_call.1} parent=11 // pred_fallthru
          _
        // Predicated region
        $region17: #{tpu_custom_call.1} parent=11 // pred_check
          %p124 = pneg %p54
        $region18: #{tpu_custom_call.1} parent=11 // pred_check_branch
          %126 = sbr.rel (%p124) target = $region20
        $region19: #{tpu_custom_call.1} parent=11 // pred_region
          _
        $region20: #{tpu_custom_call.1} parent=11 // pred_fallthru
          _
      $region12: #{tpu_custom_call.1} parent=5 // pred_fallthru
        _
      %p127 = scmp.lt.s32.totalorder %s12, 2
      // Predicated region
      $region21: #{tpu_custom_call.1} parent=5 // pred_check
        %p128 = pneg %p127
      $region22: #{tpu_custom_call.1} parent=5 // pred_check_branch
        %130 = sbr.rel (%p128) target = $region24
      $region23: #{tpu_custom_call.1} parent=5 // pred_region
        // Predicated region
        $region25: #{tpu_custom_call.1} parent=23 // pred_check
          %p131 = pneg %p74
        $region26: #{tpu_custom_call.1} parent=23 // pred_check_branch
          %133 = sbr.rel (%p131) target = $region28
        $region27: #{tpu_custom_call.1} parent=23 // pred_region
          %s134 = sand.u32 %s64, 1
          %s135 = scalar_lea.sflag [#allocation3], %s134
          %s136 = sand.u32 %s64, 1
          %s137 = smul.addr %s136, 64
          %s138 = scalar_lea.vmem [#allocation2], %s137
          %s139 = smul.u32 4, %s12
          %s141 = ssub.s32 1024, 1024
          %142 = vsyncadd %s135, %s141
          %s143 = smul.addr %s139, 2
          %s144 = smul.addr %s143, 128
          %s145 = scalar_lea.hbm %s2, %s144
          %s146 = sshll.u32 %s138, 4
          %s147 = int_to_ptr.vmem [resolvable:$true] %s146
          %152 = dma.hbm_to_vmem [thread:$0]  %s145, 1024, %s147, %s135, 128, 128, 8
        $region28: #{tpu_custom_call.1} parent=23 // pred_fallthru
          _
      $region24: #{tpu_custom_call.1} parent=5 // pred_fallthru
        _
      %p153 = scmp.le.s32.totalorder 1, %s12
      %p154 = scmp.lt.s32.totalorder %s12, 3
      %p155 = pnand %p153, %p154
      %p156 = pneg %p155
      // Predicated region
      $region29: #{tpu_custom_call.1} parent=5 // pred_check
        _
      $region30: #{tpu_custom_call.1} parent=5 // pred_check_branch
        %158 = sbr.rel (%p155) target = $region32
      $region31: #{tpu_custom_call.1} parent=5 // pred_region
        %s159 = ssub.s32 %s12, 1
        %s160 = sand.u32 %s67, 1
        %s161 = scalar_lea.sflag [#allocation3], %s160
        %s162 = sand.u32 %s67, 1
        %s163 = smul.addr %s162, 64
        %s164 = scalar_lea.vmem [#allocation2], %s163
        // Predicated region
        $region33: #{tpu_custom_call.1} parent=31 // pred_check
          %p165 = pneg %p80
        $region34: #{tpu_custom_call.1} parent=31 // pred_check_branch
          %167 = sbr.rel (%p165) target = $region36
        $region35: #{tpu_custom_call.1} parent=31 // pred_region
          %168 = dma.done %s161, 1024
        $region36: #{tpu_custom_call.1} parent=31 // pred_fallthru
          _
        %p169 = pneg %p33
        %p170 = pneg %p30
        %p171 = pneg %p54
        %p172 = pneg %p51
        %s173 = sand.u32 %s67, 1
        %s174 = scalar_lea.sflag [#allocation3], %s173
        %s175 = sand.u32 %s67, 1
        %s176 = smul.addr %s175, 64
        %s177 = scalar_lea.vmem [#allocation2], %s176
        %p178 = pneg %p80
        %p179 = pneg %p77
        %p180 = pneg %p106
        %p181 = pneg %p103
        %s182 = smul.u32 16, %s17
        %p183 = scmp.lt.s32.totalorder %s182, 31
        %s184 = scalar_select %p183, %s182, 31
        %s185 = smul.addr %s184, 8
        %s186 = scalar_lea.vmem %s3, %s185
        %s187 = smul.u32 4, %s17
        %s188 = smul.u32 16, %s17
        %p189 = scmp.lt.s32.totalorder %s188, 31
        %s190 = scalar_select %p189, %s188, 31
        %s191 = smul.addr %s190, 8
        %s192 = scalar_lea.vmem %s3, %s191
        %s193 = smul.u32 16, %s17
        %v194 = vld [vmem:[%s164] sm:$0xff]
        %v195 = vld [vmem:[%s164 + $0x8] sm:$0xff]
        %v196 = vld [vmem:[%s164 + $0x10] sm:$0xff]
        %v197 = vld [vmem:[%s164 + $0x18] sm:$0xff]
        %v198 = vld [vmem:[%s164 + $0x20] sm:$0xff]
        %v199 = vld [vmem:[%s164 + $0x28] sm:$0xff]
        %v200 = vld [vmem:[%s164 + $0x30] sm:$0xff]
        %v201 = vld [vmem:[%s164 + $0x38] sm:$0xff]
        %v202 = vld [vmem:[%s0] sm:$0xff]
        %v203 = vld [vmem:[%s0 + $0x8] sm:$0xff]
        %v204 = vld [vmem:[%s0 + $0x10] sm:$0xff]
        %v205 = vld [vmem:[%s0 + $0x18] sm:$0xff]
        %v206 = vld [vmem:[%s1] sm:$0xff]
        %v207 = vld [vmem:[%s1 + $0x8] sm:$0xff]
        %vm208 = vcmask 130048
        %v210 = vsel %vm208, %v202, 0
        %v213 = vsel %vm208, %v203, 0
        %v216 = vsel %vm208, %v204, 0
        %v219 = vsel %vm208, %v205, 0
        %221 = vmatprep.subr.mxu0 0.0
        %222 = vmatpush1.msra.mxu0 0.0
        %223 = vmatprep.subr.mxu0 0.0
        %224 = vmatpush1.msra.mxu0 0.0
        %225 = vmatprep.subr.mxu0 0.0
        %226 = vmatpush1.msra.mxu0 0.0
        %227 = vmatprep.subr.mxu0 0.0
        %228 = vmatpush1.msra.mxu0 0.0
        %229 = vmatprep.subr.mxu0 0.0
        %230 = vmatpush1.msra.mxu0 0.0
        %231 = vmatprep.subr.mxu0 0.0
        %232 = vmatpush1.msra.mxu0 0.0
        %233 = vmatprep.subr.mxu0 0.0
        %234 = vmatpush1.msra.mxu0 0.0
        %235 = vmatprep.subr.mxu0 0.0
        %236 = vmatpush1.msra.mxu0 0.0
        %237 = vmatprep.subr.mxu0 0.0
        %238 = vmatpush1.msra.mxu0 0.0
        %239 = vmatprep.subr.mxu0 0.0
        %240 = vmatpush1.msra.mxu0 0.0
        %241 = vmatprep.subr.mxu0 0.0
        %242 = vmatpush1.msra.mxu0 0.0
        %243 = vmatprep.subr.mxu0 0.0
        %244 = vmatpush1.msra.mxu0 0.0
        %245 = vmatprep.subr.mxu0 0.0
        %246 = vmatpush1.msra.mxu0 0.0
        %247 = vmatprep.subr.mxu0 0.0
        %248 = vmatpush1.msra.mxu0 0.0
        %249 = vmatprep.subr.mxu0 0.0
        %250 = vmatpush1.msra.mxu0 %v195
        %251 = vmatprep.subr.mxu0 0.0
        %252 = vmatpush1.msra.mxu0 %v194
        %253 = vmatprep.subr.mxu0 0.0
        %254 = vmatpush2.msra.mxu0 0.0
        %255 = vmatprep.subr.mxu0 0.0
        %256 = vmatpush2.msra.mxu0 0.0
        %257 = vmatprep.subr.mxu0 0.0
        %258 = vmatpush2.msra.mxu0 0.0
        %259 = vmatprep.subr.mxu0 0.0
        %260 = vmatpush2.msra.mxu0 0.0
        %261 = vmatprep.subr.mxu0 0.0
        %262 = vmatpush2.msra.mxu0 0.0
        %263 = vmatprep.subr.mxu0 0.0
        %264 = vmatpush2.msra.mxu0 0.0
        %265 = vmatprep.subr.mxu0 0.0
        %266 = vmatpush2.msra.mxu0 0.0
        %267 = vmatprep.subr.mxu0 0.0
        %268 = vmatpush2.msra.mxu0 0.0
        %269 = vmatprep.subr.mxu0 0.0
        %270 = vmatpush2.msra.mxu0 0.0
        %271 = vmatprep.subr.mxu0 0.0
        %272 = vmatpush2.msra.mxu0 0.0
        %273 = vmatprep.subr.mxu0 0.0
        %274 = vmatpush2.msra.mxu0 0.0
        %275 = vmatprep.subr.mxu0 0.0
        %276 = vmatpush2.msra.mxu0 0.0
        %277 = vmatprep.subr.mxu0 0.0
        %278 = vmatpush2.msra.mxu0 0.0
        %279 = vmatprep.subr.mxu0 0.0
        %280 = vmatpush2.msra.mxu0 0.0
        %281 = vmatprep.subr.mxu0 0.0
        %282 = vmatpush2.msra.mxu0 0.0
        %283 = vmatprep.subr.mxu0 0.0
        %284 = vmatpush2.msra.mxu0 0.0
        %285 = vmatprep.mubr.f32.mxu0 0.0
        %286 = vmatmul.mubr.f32.gmra.mxu0 %v210
        %v287 = vpop.f32.mrf.mxu0
        %v288 = vadd.f32 0.0, %v287
        %v289 = vpop.f32.mrf.mxu0
        %290 = vmatprep.mubr.f32.mxu0 0.0
        %291 = vmatmul.mubr.f32.gmra.mxu0 %v213
        %v292 = vpop.f32.mrf.mxu0
        %v293 = vadd.f32 0.0, %v292
        %v294 = vpop.f32.mrf.mxu0
        %295 = vmatprep.mubr.f32.mxu0 0.0
        %296 = vmatmul.mubr.f32.gmra.mxu0 %v216
        %v297 = vpop.f32.mrf.mxu0
        %v298 = vadd.f32 0.0, %v297
        %v299 = vpop.f32.mrf.mxu0
        %300 = vmatprep.mubr.f32.mxu0 0.0
        %301 = vmatmul.mubr.f32.gmra.mxu0 %v219
        %v302 = vpop.f32.mrf.mxu0
        %v303 = vadd.f32 0.0, %v302
        %v304 = vpop.f32.mrf.mxu0
        %305 = vdwg.mxu0
        %306 = vmatprep.subr.mxu0 0.0
        %307 = vmatpush1.msra.mxu0 0.0
        %308 = vmatprep.subr.mxu0 0.0
        %309 = vmatpush1.msra.mxu0 0.0
        %310 = vmatprep.subr.mxu0 0.0
        %311 = vmatpush1.msra.mxu0 0.0
        %312 = vmatprep.subr.mxu0 0.0
        %313 = vmatpush1.msra.mxu0 0.0
        %314 = vmatprep.subr.mxu0 0.0
        %315 = vmatpush1.msra.mxu0 0.0
        %316 = vmatprep.subr.mxu0 0.0
        %317 = vmatpush1.msra.mxu0 0.0
        %318 = vmatprep.subr.mxu0 0.0
        %319 = vmatpush1.msra.mxu0 0.0
        %320 = vmatprep.subr.mxu0 0.0
        %321 = vmatpush1.msra.mxu0 0.0
        %322 = vmatprep.subr.mxu0 0.0
        %323 = vmatpush1.msra.mxu0 0.0
        %324 = vmatprep.subr.mxu0 0.0
        %325 = vmatpush1.msra.mxu0 0.0
        %326 = vmatprep.subr.mxu0 0.0
        %327 = vmatpush1.msra.mxu0 0.0
        %328 = vmatprep.subr.mxu0 0.0
        %329 = vmatpush1.msra.mxu0 0.0
        %330 = vmatprep.subr.mxu0 0.0
        %331 = vmatpush1.msra.mxu0 0.0
        %332 = vmatprep.subr.mxu0 0.0
        %333 = vmatpush1.msra.mxu0 0.0
        %334 = vmatprep.subr.mxu0 0.0
        %335 = vmatpush1.msra.mxu0 %v197
        %336 = vmatprep.subr.mxu0 0.0
        %337 = vmatpush1.msra.mxu0 %v196
        %338 = vmatprep.subr.mxu0 0.0
        %339 = vmatpush2.msra.mxu0 0.0
        %340 = vmatprep.subr.mxu0 0.0
        %341 = vmatpush2.msra.mxu0 0.0
        %342 = vmatprep.subr.mxu0 0.0
        %343 = vmatpush2.msra.mxu0 0.0
        %344 = vmatprep.subr.mxu0 0.0
        %345 = vmatpush2.msra.mxu0 0.0
        %346 = vmatprep.subr.mxu0 0.0
        %347 = vmatpush2.msra.mxu0 0.0
        %348 = vmatprep.subr.mxu0 0.0
        %349 = vmatpush2.msra.mxu0 0.0
        %350 = vmatprep.subr.mxu0 0.0
        %351 = vmatpush2.msra.mxu0 0.0
        %352 = vmatprep.subr.mxu0 0.0
        %353 = vmatpush2.msra.mxu0 0.0
        %354 = vmatprep.subr.mxu0 0.0
        %355 = vmatpush2.msra.mxu0 0.0
        %356 = vmatprep.subr.mxu0 0.0
        %357 = vmatpush2.msra.mxu0 0.0
        %358 = vmatprep.subr.mxu0 0.0
        %359 = vmatpush2.msra.mxu0 0.0
        %360 = vmatprep.subr.mxu0 0.0
        %361 = vmatpush2.msra.mxu0 0.0
        %362 = vmatprep.subr.mxu0 0.0
        %363 = vmatpush2.msra.mxu0 0.0
        %364 = vmatprep.subr.mxu0 0.0
        %365 = vmatpush2.msra.mxu0 0.0
        %366 = vmatprep.subr.mxu0 0.0
        %367 = vmatpush2.msra.mxu0 0.0
        %368 = vmatprep.subr.mxu0 0.0
        %369 = vmatpush2.msra.mxu0 0.0
        %370 = vmatprep.mubr.f32.mxu0 0.0
        %371 = vmatmul.mubr.f32.gmra.mxu0 %v210
        %v372 = vpop.f32.mrf.mxu0
        %v373 = vadd.f32 0.0, %v372
        %v374 = vpop.f32.mrf.mxu0
        %375 = vmatprep.mubr.f32.mxu0 0.0
        %376 = vmatmul.mubr.f32.gmra.mxu0 %v213
        %v377 = vpop.f32.mrf.mxu0
        %v378 = vadd.f32 0.0, %v377
        %v379 = vpop.f32.mrf.mxu0
        %380 = vmatprep.mubr.f32.mxu0 0.0
        %381 = vmatmul.mubr.f32.gmra.mxu0 %v216
        %v382 = vpop.f32.mrf.mxu0
        %v383 = vadd.f32 0.0, %v382
        %v384 = vpop.f32.mrf.mxu0
        %385 = vmatprep.mubr.f32.mxu0 0.0
        %386 = vmatmul.mubr.f32.gmra.mxu0 %v219
        %v387 = vpop.f32.mrf.mxu0
        %v388 = vadd.f32 0.0, %v387
        %v389 = vpop.f32.mrf.mxu0
        %390 = vdwg.mxu0
        %391 = vmatprep.subr.mxu0 0.0
        %392 = vmatpush1.msra.mxu0 0.0
        %393 = vmatprep.subr.mxu0 0.0
        %394 = vmatpush1.msra.mxu0 0.0
        %395 = vmatprep.subr.mxu0 0.0
        %396 = vmatpush1.msra.mxu0 0.0
        %397 = vmatprep.subr.mxu0 0.0
        %398 = vmatpush1.msra.mxu0 0.0
        %399 = vmatprep.subr.mxu0 0.0
        %400 = vmatpush1.msra.mxu0 0.0
        %401 = vmatprep.subr.mxu0 0.0
        %402 = vmatpush1.msra.mxu0 0.0
        %403 = vmatprep.subr.mxu0 0.0
        %404 = vmatpush1.msra.mxu0 0.0
        %405 = vmatprep.subr.mxu0 0.0
        %406 = vmatpush1.msra.mxu0 0.0
        %407 = vmatprep.subr.mxu0 0.0
        %408 = vmatpush1.msra.mxu0 0.0
        %409 = vmatprep.subr.mxu0 0.0
        %410 = vmatpush1.msra.mxu0 0.0
        %411 = vmatprep.subr.mxu0 0.0
        %412 = vmatpush1.msra.mxu0 0.0
        %413 = vmatprep.subr.mxu0 0.0
        %414 = vmatpush1.msra.mxu0 0.0
        %415 = vmatprep.subr.mxu0 0.0
        %416 = vmatpush1.msra.mxu0 0.0
        %417 = vmatprep.subr.mxu0 0.0
        %418 = vmatpush1.msra.mxu0 0.0
        %419 = vmatprep.subr.mxu0 0.0
        %420 = vmatpush1.msra.mxu0 %v199
        %421 = vmatprep.subr.mxu0 0.0
        %422 = vmatpush1.msra.mxu0 %v198
        %423 = vmatprep.subr.mxu0 0.0
        %424 = vmatpush2.msra.mxu0 0.0
        %425 = vmatprep.subr.mxu0 0.0
        %426 = vmatpush2.msra.mxu0 0.0
        %427 = vmatprep.subr.mxu0 0.0
        %428 = vmatpush2.msra.mxu0 0.0
        %429 = vmatprep.subr.mxu0 0.0
        %430 = vmatpush2.msra.mxu0 0.0
        %431 = vmatprep.subr.mxu0 0.0
        %432 = vmatpush2.msra.mxu0 0.0
        %433 = vmatprep.subr.mxu0 0.0
        %434 = vmatpush2.msra.mxu0 0.0
        %435 = vmatprep.subr.mxu0 0.0
        %436 = vmatpush2.msra.mxu0 0.0
        %437 = vmatprep.subr.mxu0 0.0
        %438 = vmatpush2.msra.mxu0 0.0
        %439 = vmatprep.subr.mxu0 0.0
        %440 = vmatpush2.msra.mxu0 0.0
        %441 = vmatprep.subr.mxu0 0.0
        %442 = vmatpush2.msra.mxu0 0.0
        %443 = vmatprep.subr.mxu0 0.0
        %444 = vmatpush2.msra.mxu0 0.0
        %445 = vmatprep.subr.mxu0 0.0
        %446 = vmatpush2.msra.mxu0 0.0
        %447 = vmatprep.subr.mxu0 0.0
        %448 = vmatpush2.msra.mxu0 0.0
        %449 = vmatprep.subr.mxu0 0.0
        %450 = vmatpush2.msra.mxu0 0.0
        %451 = vmatprep.subr.mxu0 0.0
        %452 = vmatpush2.msra.mxu0 0.0
        %453 = vmatprep.subr.mxu0 0.0
        %454 = vmatpush2.msra.mxu0 0.0
        %455 = vmatprep.mubr.f32.mxu0 0.0
        %456 = vmatmul.mubr.f32.gmra.mxu0 %v210
        %v457 = vpop.f32.mrf.mxu0
        %v458 = vadd.f32 0.0, %v457
        %v459 = vpop.f32.mrf.mxu0
        %460 = vmatprep.mubr.f32.mxu0 0.0
        %461 = vmatmul.mubr.f32.gmra.mxu0 %v213
        %v462 = vpop.f32.mrf.mxu0
        %v463 = vadd.f32 0.0, %v462
        %v464 = vpop.f32.mrf.mxu0
        %465 = vmatprep.mubr.f32.mxu0 0.0
        %466 = vmatmul.mubr.f32.gmra.mxu0 %v216
        %v467 = vpop.f32.mrf.mxu0
        %v468 = vadd.f32 0.0, %v467
        %v469 = vpop.f32.mrf.mxu0
        %470 = vmatprep.mubr.f32.mxu0 0.0
        %471 = vmatmul.mubr.f32.gmra.mxu0 %v219
        %v472 = vpop.f32.mrf.mxu0
        %v473 = vadd.f32 0.0, %v472
        %v474 = vpop.f32.mrf.mxu0
        %475 = vdwg.mxu0
        %476 = vmatprep.subr.mxu0 0.0
        %477 = vmatpush1.msra.mxu0 0.0
        %478 = vmatprep.subr.mxu0 0.0
        %479 = vmatpush1.msra.mxu0 0.0
        %480 = vmatprep.subr.mxu0 0.0
        %481 = vmatpush1.msra.mxu0 0.0
        %482 = vmatprep.subr.mxu0 0.0
        %483 = vmatpush1.msra.mxu0 0.0
        %484 = vmatprep.subr.mxu0 0.0
        %485 = vmatpush1.msra.mxu0 0.0
        %486 = vmatprep.subr.mxu0 0.0
        %487 = vmatpush1.msra.mxu0 0.0
        %488 = vmatprep.subr.mxu0 0.0
        %489 = vmatpush1.msra.mxu0 0.0
        %490 = vmatprep.subr.mxu0 0.0
        %491 = vmatpush1.msra.mxu0 0.0
        %492 = vmatprep.subr.mxu0 0.0
        %493 = vmatpush1.msra.mxu0 0.0
        %494 = vmatprep.subr.mxu0 0.0
        %495 = vmatpush1.msra.mxu0 0.0
        %496 = vmatprep.subr.mxu0 0.0
        %497 = vmatpush1.msra.mxu0 0.0
        %498 = vmatprep.subr.mxu0 0.0
        %499 = vmatpush1.msra.mxu0 0.0
        %500 = vmatprep.subr.mxu0 0.0
        %501 = vmatpush1.msra.mxu0 0.0
        %502 = vmatprep.subr.mxu0 0.0
        %503 = vmatpush1.msra.mxu0 0.0
        %504 = vmatprep.subr.mxu0 0.0
        %505 = vmatpush1.msra.mxu0 %v201
        %506 = vmatprep.subr.mxu0 0.0
        %507 = vmatpush1.msra.mxu0 %v200
        %508 = vmatprep.subr.mxu0 0.0
        %509 = vmatpush2.msra.mxu0 0.0
        %510 = vmatprep.subr.mxu0 0.0
        %511 = vmatpush2.msra.mxu0 0.0
        %512 = vmatprep.subr.mxu0 0.0
        %513 = vmatpush2.msra.mxu0 0.0
        %514 = vmatprep.subr.mxu0 0.0
        %515 = vmatpush2.msra.mxu0 0.0
        %516 = vmatprep.subr.mxu0 0.0
        %517 = vmatpush2.msra.mxu0 0.0
        %518 = vmatprep.subr.mxu0 0.0
        %519 = vmatpush2.msra.mxu0 0.0
        %520 = vmatprep.subr.mxu0 0.0
        %521 = vmatpush2.msra.mxu0 0.0
        %522 = vmatprep.subr.mxu0 0.0
        %523 = vmatpush2.msra.mxu0 0.0
        %524 = vmatprep.subr.mxu0 0.0
        %525 = vmatpush2.msra.mxu0 0.0
        %526 = vmatprep.subr.mxu0 0.0
        %527 = vmatpush2.msra.mxu0 0.0
        %528 = vmatprep.subr.mxu0 0.0
        %529 = vmatpush2.msra.mxu0 0.0
        %530 = vmatprep.subr.mxu0 0.0
        %531 = vmatpush2.msra.mxu0 0.0
        %532 = vmatprep.subr.mxu0 0.0
        %533 = vmatpush2.msra.mxu0 0.0
        %534 = vmatprep.subr.mxu0 0.0
        %535 = vmatpush2.msra.mxu0 0.0
        %536 = vmatprep.subr.mxu0 0.0
        %537 = vmatpush2.msra.mxu0 0.0
        %538 = vmatprep.subr.mxu0 0.0
        %539 = vmatpush2.msra.mxu0 0.0
        %540 = vmatprep.mubr.f32.mxu0 0.0
        %541 = vmatmul.mubr.f32.gmra.mxu0 %v210
        %v542 = vpop.f32.mrf.mxu0
        %v543 = vadd.f32 0.0, %v542
        %v544 = vpop.f32.mrf.mxu0
        %545 = vmatprep.mubr.f32.mxu0 0.0
        %546 = vmatmul.mubr.f32.gmra.mxu0 %v213
        %v547 = vpop.f32.mrf.mxu0
        %v548 = vadd.f32 0.0, %v547
        %v549 = vpop.f32.mrf.mxu0
        %550 = vmatprep.mubr.f32.mxu0 0.0
        %551 = vmatmul.mubr.f32.gmra.mxu0 %v216
        %v552 = vpop.f32.mrf.mxu0
        %v553 = vadd.f32 0.0, %v552
        %v554 = vpop.f32.mrf.mxu0
        %555 = vmatprep.mubr.f32.mxu0 0.0
        %556 = vmatmul.mubr.f32.gmra.mxu0 %v219
        %v557 = vpop.f32.mrf.mxu0
        %v558 = vadd.f32 0.0, %v557
        %v559 = vpop.f32.mrf.mxu0
        %560 = vdwg.mxu0
        %v562 = vsel %vm208, %v288, 0
        %v565 = vsel %vm208, %v293, 0
        %v568 = vsel %vm208, %v298, 0
        %v571 = vsel %vm208, %v303, 0
        %v574 = vsel %vm208, %v373, 0
        %v577 = vsel %vm208, %v378, 0
        %v580 = vsel %vm208, %v383, 0
        %v583 = vsel %vm208, %v388, 0
        %v586 = vsel %vm208, %v458, 0
        %v589 = vsel %vm208, %v463, 0
        %v592 = vsel %vm208, %v468, 0
        %v595 = vsel %vm208, %v473, 0
        %v598 = vsel %vm208, %v543, 0
        %v601 = vsel %vm208, %v548, 0
        %v604 = vsel %vm208, %v553, 0
        %v607 = vsel %vm208, %v558, 0
        %609 = vmatprep.subr.mxu0 0.0
        %610 = vmatpush1.msra.mxu0 0.0
        %611 = vmatprep.subr.mxu0 0.0
        %612 = vmatpush1.msra.mxu0 0.0
        %613 = vmatprep.subr.mxu0 0.0
        %614 = vmatpush1.msra.mxu0 0.0
        %615 = vmatprep.subr.mxu0 0.0
        %616 = vmatpush1.msra.mxu0 0.0
        %617 = vmatprep.subr.mxu0 0.0
        %618 = vmatpush1.msra.mxu0 0.0
        %619 = vmatprep.subr.mxu0 0.0
        %620 = vmatpush1.msra.mxu0 0.0
        %621 = vmatprep.subr.mxu0 0.0
        %622 = vmatpush1.msra.mxu0 0.0
        %623 = vmatprep.subr.mxu0 0.0
        %624 = vmatpush1.msra.mxu0 0.0
        %625 = vmatprep.subr.mxu0 0.0
        %626 = vmatpush1.msra.mxu0 0.0
        %627 = vmatprep.subr.mxu0 0.0
        %628 = vmatpush1.msra.mxu0 0.0
        %629 = vmatprep.subr.mxu0 0.0
        %630 = vmatpush1.msra.mxu0 0.0
        %631 = vmatprep.subr.mxu0 0.0
        %632 = vmatpush1.msra.mxu0 0.0
        %633 = vmatprep.subr.mxu0 0.0
        %634 = vmatpush1.msra.mxu0 0.0
        %635 = vmatprep.subr.mxu0 0.0
        %636 = vmatpush1.msra.mxu0 0.0
        %637 = vmatprep.subr.mxu0 0.0
        %638 = vmatpush1.msra.mxu0 %v207
        %639 = vmatprep.subr.mxu0 0.0
        %640 = vmatpush1.msra.mxu0 %v206
        %641 = vmatprep.subr.mxu0 0.0
        %642 = vmatpush2.msra.mxu0 0.0
        %643 = vmatprep.subr.mxu0 0.0
        %644 = vmatpush2.msra.mxu0 0.0
        %645 = vmatprep.subr.mxu0 0.0
        %646 = vmatpush2.msra.mxu0 0.0
        %647 = vmatprep.subr.mxu0 0.0
        %648 = vmatpush2.msra.mxu0 0.0
        %649 = vmatprep.subr.mxu0 0.0
        %650 = vmatpush2.msra.mxu0 0.0
        %651 = vmatprep.subr.mxu0 0.0
        %652 = vmatpush2.msra.mxu0 0.0
        %653 = vmatprep.subr.mxu0 0.0
        %654 = vmatpush2.msra.mxu0 0.0
        %655 = vmatprep.subr.mxu0 0.0
        %656 = vmatpush2.msra.mxu0 0.0
        %657 = vmatprep.subr.mxu0 0.0
        %658 = vmatpush2.msra.mxu0 0.0
        %659 = vmatprep.subr.mxu0 0.0
        %660 = vmatpush2.msra.mxu0 0.0
        %661 = vmatprep.subr.mxu0 0.0
        %662 = vmatpush2.msra.mxu0 0.0
        %663 = vmatprep.subr.mxu0 0.0
        %664 = vmatpush2.msra.mxu0 0.0
        %665 = vmatprep.subr.mxu0 0.0
        %666 = vmatpush2.msra.mxu0 0.0
        %667 = vmatprep.subr.mxu0 0.0
        %668 = vmatpush2.msra.mxu0 0.0
        %669 = vmatprep.subr.mxu0 0.0
        %670 = vmatpush2.msra.mxu0 0.0
        %671 = vmatprep.subr.mxu0 0.0
        %672 = vmatpush2.msra.mxu0 0.0
        %673 = vmatprep.mubr.f32.mxu0 0.0
        %674 = vmatmul.mubr.f32.gmra.mxu0 %v562
        %v675 = vpop.f32.mrf.mxu0
        %v676 = vadd.f32 0.0, %v675
        %v677 = vpop.f32.mrf.mxu0
        %678 = vmatprep.mubr.f32.mxu0 0.0
        %679 = vmatmul.mubr.f32.gmra.mxu0 %v565
        %v680 = vpop.f32.mrf.mxu0
        %v681 = vadd.f32 0.0, %v680
        %v682 = vpop.f32.mrf.mxu0
        %683 = vmatprep.mubr.f32.mxu0 0.0
        %684 = vmatmul.mubr.f32.gmra.mxu0 %v568
        %v685 = vpop.f32.mrf.mxu0
        %v686 = vadd.f32 0.0, %v685
        %v687 = vpop.f32.mrf.mxu0
        %688 = vmatprep.mubr.f32.mxu0 0.0
        %689 = vmatmul.mubr.f32.gmra.mxu0 %v571
        %v690 = vpop.f32.mrf.mxu0
        %v691 = vadd.f32 0.0, %v690
        %v692 = vpop.f32.mrf.mxu0
        %693 = vmatprep.mubr.f32.mxu0 0.0
        %694 = vmatmul.mubr.f32.gmra.mxu0 %v574
        %v695 = vpop.f32.mrf.mxu0
        %v696 = vadd.f32 0.0, %v695
        %v697 = vpop.f32.mrf.mxu0
        %698 = vmatprep.mubr.f32.mxu0 0.0
        %699 = vmatmul.mubr.f32.gmra.mxu0 %v577
        %v700 = vpop.f32.mrf.mxu0
        %v701 = vadd.f32 0.0, %v700
        %v702 = vpop.f32.mrf.mxu0
        %703 = vmatprep.mubr.f32.mxu0 0.0
        %704 = vmatmul.mubr.f32.gmra.mxu0 %v580
        %v705 = vpop.f32.mrf.mxu0
        %v706 = vadd.f32 0.0, %v705
        %v707 = vpop.f32.mrf.mxu0
        %708 = vmatprep.mubr.f32.mxu0 0.0
        %709 = vmatmul.mubr.f32.gmra.mxu0 %v583
        %v710 = vpop.f32.mrf.mxu0
        %v711 = vadd.f32 0.0, %v710
        %v712 = vpop.f32.mrf.mxu0
        %713 = vmatprep.mubr.f32.mxu0 0.0
        %714 = vmatmul.mubr.f32.gmra.mxu0 %v586
        %v715 = vpop.f32.mrf.mxu0
        %v716 = vadd.f32 0.0, %v715
        %v717 = vpop.f32.mrf.mxu0
        %718 = vmatprep.mubr.f32.mxu0 0.0
        %719 = vmatmul.mubr.f32.gmra.mxu0 %v589
        %v720 = vpop.f32.mrf.mxu0
        %v721 = vadd.f32 0.0, %v720
        %v722 = vpop.f32.mrf.mxu0
        %723 = vmatprep.mubr.f32.mxu0 0.0
        %724 = vmatmul.mubr.f32.gmra.mxu0 %v592
        %v725 = vpop.f32.mrf.mxu0
        %v726 = vadd.f32 0.0, %v725
        %v727 = vpop.f32.mrf.mxu0
        %728 = vmatprep.mubr.f32.mxu0 0.0
        %729 = vmatmul.mubr.f32.gmra.mxu0 %v595
        %v730 = vpop.f32.mrf.mxu0
        %v731 = vadd.f32 0.0, %v730
        %v732 = vpop.f32.mrf.mxu0
        %733 = vmatprep.mubr.f32.mxu0 0.0
        %734 = vmatmul.mubr.f32.gmra.mxu0 %v598
        %v735 = vpop.f32.mrf.mxu0
        %v736 = vadd.f32 0.0, %v735
        %v737 = vpop.f32.mrf.mxu0
        %738 = vmatprep.mubr.f32.mxu0 0.0
        %739 = vmatmul.mubr.f32.gmra.mxu0 %v601
        %v740 = vpop.f32.mrf.mxu0
        %v741 = vadd.f32 0.0, %v740
        %v742 = vpop.f32.mrf.mxu0
        %743 = vmatprep.mubr.f32.mxu0 0.0
        %744 = vmatmul.mubr.f32.gmra.mxu0 %v604
        %v745 = vpop.f32.mrf.mxu0
        %v746 = vadd.f32 0.0, %v745
        %v747 = vpop.f32.mrf.mxu0
        %748 = vmatprep.mubr.f32.mxu0 0.0
        %749 = vmatmul.mubr.f32.gmra.mxu0 %v607
        %v750 = vpop.f32.mrf.mxu0
        %v751 = vadd.f32 0.0, %v750
        %v752 = vpop.f32.mrf.mxu0
        %753 = vdwg.mxu0
        %vm754 = vcmask 261120
        %755 = vst.msk [vmem:[%s192] sm:$0xff] %vm754, %v676
        %756 = vst.msk [vmem:[%s192 + $0x8] sm:$0xff] %vm754, %v681
        %757 = vst.msk [vmem:[%s192 + $0x10] sm:$0xff] %vm754, %v686
        %758 = vst.msk [vmem:[%s192 + $0x18] sm:$0xff] %vm754, %v691
        %759 = vst.msk [vmem:[%s192 + $0x20] sm:$0xff] %vm754, %v696
        %760 = vst.msk [vmem:[%s192 + $0x28] sm:$0xff] %vm754, %v701
        %761 = vst.msk [vmem:[%s192 + $0x30] sm:$0xff] %vm754, %v706
        %762 = vst.msk [vmem:[%s192 + $0x38] sm:$0xff] %vm754, %v711
        %763 = vst.msk [vmem:[%s192 + $0x40] sm:$0xff] %vm754, %v716
        %764 = vst.msk [vmem:[%s192 + $0x48] sm:$0xff] %vm754, %v721
        %765 = vst.msk [vmem:[%s192 + $0x50] sm:$0xff] %vm754, %v726
        %766 = vst.msk [vmem:[%s192 + $0x58] sm:$0xff] %vm754, %v731
        %767 = vst.msk [vmem:[%s192 + $0x60] sm:$0xff] %vm754, %v736
        %768 = vst.msk [vmem:[%s192 + $0x68] sm:$0xff] %vm754, %v741
        %769 = vst.msk [vmem:[%s192 + $0x70] sm:$0xff] %vm754, %v746
        %770 = vst.msk [vmem:[%s192 + $0x78] sm:$0xff] %vm754, %v751
        %s771 = smul.u32 16, %s17
        %p772 = scmp.lt.s32.totalorder %s771, 31
        %s773 = scalar_select %p772, %s771, 31
        %s774 = smul.addr %s773, 8
        %s775 = scalar_lea.vmem %s3, %s774
        // Predicated region
        $region37: #{tpu_custom_call.1} parent=31 // pred_check
          %p776 = pneg %p103
        $region38: #{tpu_custom_call.1} parent=31 // pred_check_branch
          %778 = sbr.rel (%p776) target = $region40
        $region39: #{tpu_custom_call.1} parent=31 // pred_region
          %s779 = smul.u32 16, %s17
        $region40: #{tpu_custom_call.1} parent=31 // pred_fallthru
          _
      $region32: #{tpu_custom_call.1} parent=5 // pred_fallthru
        _
      %p780 = scmp.le.s32.totalorder 2, %s12
      // Predicated region
      $region41: #{tpu_custom_call.1} parent=5 // pred_check
        %p781 = pneg %p780
      $region42: #{tpu_custom_call.1} parent=5 // pred_check_branch
        %783 = sbr.rel (%p781) target = $region44
      $region43: #{tpu_custom_call.1} parent=5 // pred_region
        %s784 = ssub.s32 %s12, 2
        // Predicated region
        $region45: #{tpu_custom_call.1} parent=43 // pred_check
          %p785 = pneg %p109
        $region46: #{tpu_custom_call.1} parent=43 // pred_check_branch
          %787 = sbr.rel (%p785) target = $region48
        $region47: #{tpu_custom_call.1} parent=43 // pred_region
          %s788 = smul.u32 16, %s18
          %p789 = scmp.lt.s32.totalorder %s788, 31
          %s790 = scalar_select %p789, %s788, 31
          %s791 = smul.addr %s790, 8
          %s792 = scalar_lea.vmem %s3, %s791
        $region48: #{tpu_custom_call.1} parent=43 // pred_fallthru
          _
      $region44: #{tpu_custom_call.1} parent=5 // pred_fallthru
        _
    $region6: #{tpu_custom_call.1} parent=1 // loop_footer
      %s16 = sadd.s32 1, %s12
    $region7: #{tpu_custom_call.1} parent=1 // loop_footer_branch
      %11 = sbr.rel target = $region3
    $region8: #{tpu_custom_call.1} parent=1 // loop_exit
      _
    %793 = vsyncpa [#allocation3], 1
    %s794 = scalar_lea.sflag [#allocation3], 1
    %795 = vsyncpa %s794, 1

</llo_original>
